<compile_context>
chip_gen: v7x
topology: tpu7x:2x2x1
jax: 0.10.0
libtpu: 0.0.40
codegen_flags: <defaults>
</compile_context>

<pallas_src>
import jax
import jax.numpy as jnp
import numpy as np
from jax import lax
from jax.experimental import pallas as pl
from jax.experimental.pallas import tpu as pltpu

EPS = 1e-5
# tap order matches the (O, kh, kw, I) flattening of the 3x3 conv weight
_TAPS = tuple((dy, dx) for dy in (-1, 0, 1) for dx in (-1, 0, 1))


# --------------------------------- kernel -------------------------------------
def _make_kernel(W, Cin, Cmid, Cout, LANES):
    def kernel(x_ref, pk_ref, w1_ref, w2_ref, w3_ref, mk_ref, o_ref, col_ref):
        xb = x_ref[...]                              # (Cin, LANES) bf16
        xf = xb.astype(jnp.float32)

        # Folded BN scales / shifts, packed into one (*, 1) f32 input.
        s1 = pk_ref[0:Cin, :]
        t1 = pk_ref[Cin:2 * Cin, :]
        t2 = pk_ref[2 * Cin:2 * Cin + Cmid, :]
        t3 = pk_ref[2 * Cin + Cmid:2 * Cin + 2 * Cmid, :]
        bf = pk_ref[2 * Cin + 2 * Cmid:2 * Cin + 2 * Cmid + Cout, :]

        # ----- bn1 + relu (f32), conv1 1x1 (bn2 scale folded into w1 rows) -----
        h1 = jnp.maximum(xf * s1 + t1, 0.0).astype(jnp.bfloat16)
        m1 = jnp.dot(w1_ref[...], h1, preferred_element_type=jnp.float32)
        h2 = jnp.maximum(m1 + t2, 0.0)               # (Cmid, LANES) f32

        # ----- conv2 3x3: nine rolled+masked taps -> scratch, one big-K matmul -----
        # rolled[:, p] = h2[:, p + dy*W + dx]; the per-tap mask zeroes output
        # positions whose source pixel falls outside its own image (this also
        # kills any wrap-around across image boundaries on the flat lane axis).
        mk = mk_ref[...]                             # (9, LANES) f32
        for t, (dy, dx) in enumerate(_TAPS):
            shift = (-(dy * W + dx)) % LANES
            r = pltpu.roll(h2, shift=shift, axis=1) if shift else h2
            col_ref[t * Cmid:(t + 1) * Cmid, :] = (
                r * mk[t:t + 1, :]).astype(jnp.bfloat16)
        m2 = jnp.dot(w2_ref[...], col_ref[...], preferred_element_type=jnp.float32)
        h3 = jnp.maximum(m2 + t3, 0.0).astype(jnp.bfloat16)

        # ----- conv3 1x1 fused with the skip 1x1: [w3 | wsk] @ [h3; x] -----
        hx = jnp.concatenate([h3, xb], axis=0)       # (Cmid+Cin, LANES) bf16
        y = jnp.dot(w3_ref[...], hx, preferred_element_type=jnp.float32)
        o_ref[...] = (y + bf).astype(jnp.bfloat16)

    return kernel


# --------------------------------- wrapper ------------------------------------
def _pick_b_tile(n):
    divisors = [b for b in (16, 8, 4, 2, 1) if n % b == 0]
    for b in divisors:                 # prefer an even grid so v7x's 2 TCs both work
        if (n // b) % 2 == 0:
            return b
    return divisors[0]


def _fold_bn(bn):
    scale = (bn["gamma"] / jnp.sqrt(bn["var"] + EPS)).astype(jnp.float32)
    bias = bn["beta"].astype(jnp.float32) - bn["mean"].astype(jnp.float32) * scale
    return scale[:, None], bias[:, None]             # (C, 1) each


def _const_spec(a):
    return pl.BlockSpec(a.shape, lambda n, _nd=a.ndim: (0,) * _nd)


def residual_forward_pallas(x_nchw, params, need_skip):
    N, Cin, H, W = x_nchw.shape
    Cmid = params["conv1_w"].shape[0]
    Cout = params["conv3_w"].shape[0]
    HW = H * W
    if not need_skip:
        assert Cin == Cout, "need_skip=False requires inp_dim == out_dim"

    B_TILE = _pick_b_tile(N)
    LANES = B_TILE * HW
    grid = N // B_TILE

    # Channels-major layout: (Cin, N*H*W).  One wrapper transpose; batch and
    # spatial positions share the 128-lane axis so all matmuls are lane-wide.
    x = jnp.transpose(x_nchw, (1, 0, 2, 3)).reshape(Cin, N * HW).astype(jnp.bfloat16)

    s1, t1 = _fold_bn(params["bn1"])
    s2, t2 = _fold_bn(params["bn2"])
    s3, t3 = _fold_bn(params["bn3"])

    # torch conv weights are (Cout, Cin, kh, kw).
    w1 = params["conv1_w"][:, :, 0, 0].astype(jnp.float32)            # (Cmid, Cin)
    w3 = params["conv3_w"][:, :, 0, 0].astype(jnp.float32)            # (Cout, Cmid)
    w2cat = jnp.transpose(params["conv2_w"], (0, 2, 3, 1)).reshape(
        Cmid, 9 * Cmid).astype(jnp.float32)                           # (Cmid, 9*Cmid)

    # Fold bn2/bn3 scales into conv1/conv2 weights, conv biases into BN shifts.
    w1s = (s2 * w1).astype(jnp.bfloat16)
    w2s = (s3 * w2cat).astype(jnp.bfloat16)
    t2f = t2 + s2 * params["conv1_b"][:, None].astype(jnp.float32)
    t3f = t3 + s3 * params["conv2_b"][:, None].astype(jnp.float32)
    bfin = params["conv3_b"][:, None].astype(jnp.float32)
    if need_skip:
        wsk = params["skip_w"][:, :, 0, 0].astype(jnp.float32)        # (Cout, Cin)
        bfin = bfin + params["skip_b"][:, None].astype(jnp.float32)
    else:
        wsk = jnp.eye(Cout, Cin, dtype=jnp.float32)                   # identity skip
    w3cat = jnp.concatenate([w3, wsk], axis=1).astype(jnp.bfloat16)   # (Cout, Cmid+Cin)

    # All tiny per-channel vectors packed into ONE f32 input.
    packed = jnp.concatenate([s1, t1, t2f, t3f, bfin], axis=0)        # (2Cin+2Cmid+Cout, 1)

    # Per-tap output-position validity masks, tiled over the images of a tile.
    row = np.arange(HW) // W
    col = np.arange(HW) % W
    m = np.zeros((9, HW), np.float32)
    for t, (dy, dx) in enumerate(_TAPS):
        m[t] = ((row + dy >= 0) & (row + dy < H) &
                (col + dx >= 0) & (col + dx < W)).astype(np.float32)
    masks = jnp.asarray(np.tile(m, (1, B_TILE)))                      # (9, LANES) f32

    kernel = _make_kernel(W, Cin, Cmid, Cout, LANES)

    out = pl.pallas_call(
        kernel,
        out_shape=jax.ShapeDtypeStruct((Cout, N * HW), jnp.bfloat16),
        grid_spec=pltpu.PrefetchScalarGridSpec(
            num_scalar_prefetch=0,
            grid=(grid,),
            in_specs=[pl.BlockSpec((Cin, LANES), lambda n: (0, n)),
                      _const_spec(packed),
                      _const_spec(w1s),
                      _const_spec(w2s),
                      _const_spec(w3cat),
                      _const_spec(masks)],
            out_specs=pl.BlockSpec((Cout, LANES), lambda n: (0, n)),
            scratch_shapes=[pltpu.VMEM((9 * Cmid, LANES), jnp.bfloat16)],
        ),
        compiler_params=pltpu.CompilerParams(
            dimension_semantics=("parallel",)),
        # TODO(synk): at production sizes (Cmid>=128, HW>=2048) add a lane-tile
        # grid axis over HW and set vmem_limit_bytes for v7x's 64 MiB VMEM.
    )(x, packed, w1s, w2s, w3cat, masks)

    # Back to NCHW (bf16; downstream can cast to f32 if required).
    return jnp.transpose(out.reshape(Cout, N, H, W), (1, 0, 2, 3))


# ----------------------------- pure-JAX reference -----------------------------
def residual_forward_ref(x, params, need_skip):
    def bn(x, p):
        scale = p["gamma"] / jnp.sqrt(p["var"] + EPS)
        bias = p["beta"] - p["mean"] * scale
        return x * scale[None, :, None, None] + bias[None, :, None, None]

    def conv(x, w, b, pad):
        y = lax.conv_general_dilated(
            x, w, (1, 1), [(pad, pad), (pad, pad)],
            dimension_numbers=("NCHW", "OIHW", "NCHW"))
        return y + b[None, :, None, None]

    residual = conv(x, params["skip_w"], params["skip_b"], 0) if need_skip else x
    out = jax.nn.relu(bn(x, params["bn1"]))
    out = conv(out, params["conv1_w"], params["conv1_b"], 0)
    out = jax.nn.relu(bn(out, params["bn2"]))
    out = conv(out, params["conv2_w"], params["conv2_b"], 1)
    out = jax.nn.relu(bn(out, params["bn3"]))
    out = conv(out, params["conv3_w"], params["conv3_b"], 0)
    return out + residual


# --------------------------------- main ---------------------------------------
def _init_params(key, inp_dim, out_dim):
    mid = out_dim // 2
    ks = jax.random.split(key, 16)

    def bn_params(k, c):
        k1, k2, k3, k4 = jax.random.split(k, 4)
        return dict(gamma=jax.random.uniform(k1, (c,), minval=0.5, maxval=1.5),
                    beta=jax.random.normal(k2, (c,)) * 0.1,
                    mean=jax.random.normal(k3, (c,)) * 0.1,
                    var=jax.random.uniform(k4, (c,), minval=0.5, maxval=1.5))

    return dict(
        bn1=bn_params(ks[0], inp_dim),
        bn2=bn_params(ks[1], mid),
        bn3=bn_params(ks[2], mid),
        conv1_w=jax.random.normal(ks[3], (mid, inp_dim, 1, 1)) * 0.2,
        conv1_b=jax.random.normal(ks[4], (mid,)) * 0.05,
        conv2_w=jax.random.normal(ks[5], (mid, mid, 3, 3)) * 0.2,
        conv2_b=jax.random.normal(ks[6], (mid,)) * 0.05,
        conv3_w=jax.random.normal(ks[7], (out_dim, mid, 1, 1)) * 0.2,
        conv3_b=jax.random.normal(ks[8], (out_dim,)) * 0.05,
        skip_w=jax.random.normal(ks[9], (out_dim, inp_dim, 1, 1)) * 0.2,
        skip_b=jax.random.normal(ks[10], (out_dim,)) * 0.05,
    )


if __name__ == "__main__":
    key = jax.random.PRNGKey(0)
    kx1, kp1, kx2, kp2 = jax.random.split(key, 4)

    # bf16 matmul operands + bf16 output vs the pure-f32 reference.
    RTOL = ATOL = 5e-2

    # Case 1: inp_dim != out_dim -> need_skip=True (1x1 skip conv, fused)
    N, Cin, Cout, H, W = 2, 4, 8, 16, 16
    x = jax.random.normal(kx1, (N, Cin, H, W), dtype=jnp.float32)
    params = _init_params(kp1, Cin, Cout)
    out = jax.block_until_ready(residual_forward_pallas(x, params, True))
    ref = jax.block_until_ready(residual_forward_ref(x, params, True))
    assert out.shape == (N, Cout, H, W)
    np.testing.assert_allclose(np.asarray(out, dtype=np.float32),
                               np.asarray(ref, dtype=np.float32),
                               rtol=RTOL, atol=ATOL)

    # Case 2: inp_dim == out_dim -> identity skip (fused as identity columns)
    Cin2 = Cout2 = 8
    x2 = jax.random.normal(kx2, (N, Cin2, H, W), dtype=jnp.float32)
    params2 = _init_params(kp2, Cin2, Cout2)
    out2 = jax.block_until_ready(residual_forward_pallas(x2, params2, False))
    ref2 = jax.block_until_ready(residual_forward_ref(x2, params2, False))
    assert out2.shape == (N, Cout2, H, W)
    np.testing.assert_allclose(np.asarray(out2, dtype=np.float32),
                               np.asarray(ref2, dtype=np.float32),
                               rtol=RTOL, atol=ATOL)

    print("KERNEL_OK")
</pallas_src>

<mosaic_0001>
module attributes {stable_mosaic.version = 11 : i64} {
  func.func @kernel(%arg0: i32, %arg1: memref<4x256xbf16, #tpu.memory_space<vmem>>, %arg2: memref<24x1xf32, #tpu.memory_space<vmem>>, %arg3: memref<4x4xbf16, #tpu.memory_space<vmem>>, %arg4: memref<4x36xbf16, #tpu.memory_space<vmem>>, %arg5: memref<8x8xbf16, #tpu.memory_space<vmem>>, %arg6: memref<9x256xf32, #tpu.memory_space<vmem>>, %arg7: memref<8x256xbf16, #tpu.memory_space<vmem>>, %arg8: memref<36x256xbf16, #tpu.memory_space<vmem>>) attributes {dimension_semantics = [#tpu.dimension_semantics<parallel>], iteration_bounds = array<i64: 2>, scalar_prefetch = 0 : i64, scratch_operands = 1 : i64, tpu.core_type = #tpu.core_type<tc>, window_params = [{transform_indices = @transform_0, window_bounds = array<i64: 4, 256>}, {pipeline_mode = #tpu.pipeline_mode<synchronous>, transform_indices = @transform_1, window_bounds = array<i64: 24, 1>}, {pipeline_mode = #tpu.pipeline_mode<synchronous>, transform_indices = @transform_2, window_bounds = array<i64: 4, 4>}, {pipeline_mode = #tpu.pipeline_mode<synchronous>, transform_indices = @transform_3, window_bounds = array<i64: 4, 36>}, {pipeline_mode = #tpu.pipeline_mode<synchronous>, transform_indices = @transform_4, window_bounds = array<i64: 8, 8>}, {pipeline_mode = #tpu.pipeline_mode<synchronous>, transform_indices = @transform_5, window_bounds = array<i64: 9, 256>}, {transform_indices = @transform_6, window_bounds = array<i64: 8, 256>}]} {
    %c0 = arith.constant 0 : index
    %c0_0 = arith.constant 0 : index
    %0 = vector.load %arg1[%c0, %c0_0] : memref<4x256xbf16, #tpu.memory_space<vmem>>, vector<4x256xbf16>
    %1 = arith.extf %0 : vector<4x256xbf16> to vector<4x256xf32>
    %c0_1 = arith.constant 0 : index
    %c0_2 = arith.constant 0 : index
    %2 = vector.load %arg2[%c0_1, %c0_2] : memref<24x1xf32, #tpu.memory_space<vmem>>, vector<4x1xf32>
    %c4 = arith.constant 4 : index
    %c0_3 = arith.constant 0 : index
    %3 = vector.load %arg2[%c4, %c0_3] : memref<24x1xf32, #tpu.memory_space<vmem>>, vector<4x1xf32>
    %c8 = arith.constant 8 : index
    %c0_4 = arith.constant 0 : index
    %4 = vector.load %arg2[%c8, %c0_4] : memref<24x1xf32, #tpu.memory_space<vmem>>, vector<4x1xf32>
    %c12 = arith.constant 12 : index
    %c0_5 = arith.constant 0 : index
    %5 = vector.load %arg2[%c12, %c0_5] : memref<24x1xf32, #tpu.memory_space<vmem>>, vector<4x1xf32>
    %c16 = arith.constant 16 : index
    %c0_6 = arith.constant 0 : index
    %6 = vector.load %arg2[%c16, %c0_6] : memref<24x1xf32, #tpu.memory_space<vmem>>, vector<8x1xf32>
    %7 = vector.broadcast %2 : vector<4x1xf32> to vector<4x256xf32>
    %8 = arith.mulf %1, %7 : vector<4x256xf32>
    %9 = vector.broadcast %3 : vector<4x1xf32> to vector<4x256xf32>
    %10 = arith.addf %8, %9 : vector<4x256xf32>
    %cst = arith.constant 0.000000e+00 : f32
    %11 = vector.broadcast %cst : f32 to vector<4x256xf32>
    %12 = arith.maximumf %10, %11 : vector<4x256xf32>
    %13 = arith.truncf %12 : vector<4x256xf32> to vector<4x256xbf16>
    %c0_7 = arith.constant 0 : index
    %c0_8 = arith.constant 0 : index
    %14 = vector.load %arg3[%c0_7, %c0_8] : memref<4x4xbf16, #tpu.memory_space<vmem>>, vector<4x4xbf16>
    %cst_9 = arith.constant dense<0.000000e+00> : vector<4x256xf32>
    %15 = tpu.matmul %14, %13, %cst_9 {dimension_numbers = #tpu.dot_dimension_numbers<[1], [0], [0], [1], [0, 0, 1, 1], [], []>} : vector<4x4xbf16>, vector<4x256xbf16>, vector<4x256xf32> -> vector<4x256xf32>
    %16 = vector.broadcast %4 : vector<4x1xf32> to vector<4x256xf32>
    %17 = arith.addf %15, %16 : vector<4x256xf32>
    %cst_10 = arith.constant 0.000000e+00 : f32
    %18 = vector.broadcast %cst_10 : f32 to vector<4x256xf32>
    %19 = arith.maximumf %17, %18 : vector<4x256xf32>
    %c0_11 = arith.constant 0 : index
    %c0_12 = arith.constant 0 : index
    %20 = vector.load %arg6[%c0_11, %c0_12] : memref<9x256xf32, #tpu.memory_space<vmem>>, vector<9x256xf32>
    %c17_i32 = arith.constant 17 : i32
    %21 = tpu.dynamic_rotate %19 by %c17_i32 dim 1 : vector<4x256xf32>, i32 -> vector<4x256xf32>
    %22 = vector.extract_strided_slice %20 {offsets = [0, 0], sizes = [1, 256], strides = [1, 1]} : vector<9x256xf32> to vector<1x256xf32>
    %23 = vector.broadcast %22 : vector<1x256xf32> to vector<4x256xf32>
    %24 = arith.mulf %21, %23 : vector<4x256xf32>
    %25 = arith.truncf %24 : vector<4x256xf32> to vector<4x256xbf16>
    %c0_13 = arith.constant 0 : index
    %c0_14 = arith.constant 0 : index
    %26 = vector.load %arg8[%c0_13, %c0_14] : memref<36x256xbf16, #tpu.memory_space<vmem>>, vector<4x256xbf16>
    tpu.vector_store %arg8[%c0_13, %c0_14], %25 {strides = array<i32>} : memref<36x256xbf16, #tpu.memory_space<vmem>>, vector<4x256xbf16>,
    %c16_i32 = arith.constant 16 : i32
    %27 = tpu.dynamic_rotate %19 by %c16_i32 dim 1 : vector<4x256xf32>, i32 -> vector<4x256xf32>
    %28 = vector.extract_strided_slice %20 {offsets = [1, 0], sizes = [1, 256], strides = [1, 1]} : vector<9x256xf32> to vector<1x256xf32>
    %29 = vector.broadcast %28 : vector<1x256xf32> to vector<4x256xf32>
    %30 = arith.mulf %27, %29 : vector<4x256xf32>
    %31 = arith.truncf %30 : vector<4x256xf32> to vector<4x256xbf16>
    %c4_15 = arith.constant 4 : index
    %c0_16 = arith.constant 0 : index
    %32 = vector.load %arg8[%c4_15, %c0_16] : memref<36x256xbf16, #tpu.memory_space<vmem>>, vector<4x256xbf16>
    tpu.vector_store %arg8[%c4_15, %c0_16], %31 {strides = array<i32>} : memref<36x256xbf16, #tpu.memory_space<vmem>>, vector<4x256xbf16>,
    %c15_i32 = arith.constant 15 : i32
    %33 = tpu.dynamic_rotate %19 by %c15_i32 dim 1 : vector<4x256xf32>, i32 -> vector<4x256xf32>
    %34 = vector.extract_strided_slice %20 {offsets = [2, 0], sizes = [1, 256], strides = [1, 1]} : vector<9x256xf32> to vector<1x256xf32>
    %35 = vector.broadcast %34 : vector<1x256xf32> to vector<4x256xf32>
    %36 = arith.mulf %33, %35 : vector<4x256xf32>
    %37 = arith.truncf %36 : vector<4x256xf32> to vector<4x256xbf16>
    %c8_17 = arith.constant 8 : index
    %c0_18 = arith.constant 0 : index
    %38 = vector.load %arg8[%c8_17, %c0_18] : memref<36x256xbf16, #tpu.memory_space<vmem>>, vector<4x256xbf16>
    tpu.vector_store %arg8[%c8_17, %c0_18], %37 {strides = array<i32>} : memref<36x256xbf16, #tpu.memory_space<vmem>>, vector<4x256xbf16>,
    %c1_i32 = arith.constant 1 : i32
    %39 = tpu.dynamic_rotate %19 by %c1_i32 dim 1 : vector<4x256xf32>, i32 -> vector<4x256xf32>
    %40 = vector.extract_strided_slice %20 {offsets = [3, 0], sizes = [1, 256], strides = [1, 1]} : vector<9x256xf32> to vector<1x256xf32>
    %41 = vector.broadcast %40 : vector<1x256xf32> to vector<4x256xf32>
    %42 = arith.mulf %39, %41 : vector<4x256xf32>
    %43 = arith.truncf %42 : vector<4x256xf32> to vector<4x256xbf16>
    %c12_19 = arith.constant 12 : index
    %c0_20 = arith.constant 0 : index
    %44 = vector.load %arg8[%c12_19, %c0_20] : memref<36x256xbf16, #tpu.memory_space<vmem>>, vector<4x256xbf16>
    tpu.vector_store %arg8[%c12_19, %c0_20], %43 {strides = array<i32>} : memref<36x256xbf16, #tpu.memory_space<vmem>>, vector<4x256xbf16>,
    %45 = vector.extract_strided_slice %20 {offsets = [4, 0], sizes = [1, 256], strides = [1, 1]} : vector<9x256xf32> to vector<1x256xf32>
    %46 = vector.broadcast %45 : vector<1x256xf32> to vector<4x256xf32>
    %47 = arith.mulf %19, %46 : vector<4x256xf32>
    %48 = arith.truncf %47 : vector<4x256xf32> to vector<4x256xbf16>
    %c16_21 = arith.constant 16 : index
    %c0_22 = arith.constant 0 : index
    %49 = vector.load %arg8[%c16_21, %c0_22] : memref<36x256xbf16, #tpu.memory_space<vmem>>, vector<4x256xbf16>
    tpu.vector_store %arg8[%c16_21, %c0_22], %48 {strides = array<i32>} : memref<36x256xbf16, #tpu.memory_space<vmem>>, vector<4x256xbf16>,
    %c255_i32 = arith.constant 255 : i32
    %50 = tpu.dynamic_rotate %19 by %c255_i32 dim 1 : vector<4x256xf32>, i32 -> vector<4x256xf32>
    %51 = vector.extract_strided_slice %20 {offsets = [5, 0], sizes = [1, 256], strides = [1, 1]} : vector<9x256xf32> to vector<1x256xf32>
    %52 = vector.broadcast %51 : vector<1x256xf32> to vector<4x256xf32>
    %53 = arith.mulf %50, %52 : vector<4x256xf32>
    %54 = arith.truncf %53 : vector<4x256xf32> to vector<4x256xbf16>
    %c20 = arith.constant 20 : index
    %c0_23 = arith.constant 0 : index
    %55 = vector.load %arg8[%c20, %c0_23] : memref<36x256xbf16, #tpu.memory_space<vmem>>, vector<4x256xbf16>
    tpu.vector_store %arg8[%c20, %c0_23], %54 {strides = array<i32>} : memref<36x256xbf16, #tpu.memory_space<vmem>>, vector<4x256xbf16>,
    %c241_i32 = arith.constant 241 : i32
    %56 = tpu.dynamic_rotate %19 by %c241_i32 dim 1 : vector<4x256xf32>, i32 -> vector<4x256xf32>
    %57 = vector.extract_strided_slice %20 {offsets = [6, 0], sizes = [1, 256], strides = [1, 1]} : vector<9x256xf32> to vector<1x256xf32>
    %58 = vector.broadcast %57 : vector<1x256xf32> to vector<4x256xf32>
    %59 = arith.mulf %56, %58 : vector<4x256xf32>
    %60 = arith.truncf %59 : vector<4x256xf32> to vector<4x256xbf16>
    %c24 = arith.constant 24 : index
    %c0_24 = arith.constant 0 : index
    %61 = vector.load %arg8[%c24, %c0_24] : memref<36x256xbf16, #tpu.memory_space<vmem>>, vector<4x256xbf16>
    tpu.vector_store %arg8[%c24, %c0_24], %60 {strides = array<i32>} : memref<36x256xbf16, #tpu.memory_space<vmem>>, vector<4x256xbf16>,
    %c240_i32 = arith.constant 240 : i32
    %62 = tpu.dynamic_rotate %19 by %c240_i32 dim 1 : vector<4x256xf32>, i32 -> vector<4x256xf32>
    %63 = vector.extract_strided_slice %20 {offsets = [7, 0], sizes = [1, 256], strides = [1, 1]} : vector<9x256xf32> to vector<1x256xf32>
    %64 = vector.broadcast %63 : vector<1x256xf32> to vector<4x256xf32>
    %65 = arith.mulf %62, %64 : vector<4x256xf32>
    %66 = arith.truncf %65 : vector<4x256xf32> to vector<4x256xbf16>
    %c28 = arith.constant 28 : index
    %c0_25 = arith.constant 0 : index
    %67 = vector.load %arg8[%c28, %c0_25] : memref<36x256xbf16, #tpu.memory_space<vmem>>, vector<4x256xbf16>
    tpu.vector_store %arg8[%c28, %c0_25], %66 {strides = array<i32>} : memref<36x256xbf16, #tpu.memory_space<vmem>>, vector<4x256xbf16>,
    %c239_i32 = arith.constant 239 : i32
    %68 = tpu.dynamic_rotate %19 by %c239_i32 dim 1 : vector<4x256xf32>, i32 -> vector<4x256xf32>
    %69 = vector.extract_strided_slice %20 {offsets = [8, 0], sizes = [1, 256], strides = [1, 1]} : vector<9x256xf32> to vector<1x256xf32>
    %70 = vector.broadcast %69 : vector<1x256xf32> to vector<4x256xf32>
    %71 = arith.mulf %68, %70 : vector<4x256xf32>
    %72 = arith.truncf %71 : vector<4x256xf32> to vector<4x256xbf16>
    %c32 = arith.constant 32 : index
    %c0_26 = arith.constant 0 : index
    %73 = vector.load %arg8[%c32, %c0_26] : memref<36x256xbf16, #tpu.memory_space<vmem>>, vector<4x256xbf16>
    tpu.vector_store %arg8[%c32, %c0_26], %72 {strides = array<i32>} : memref<36x256xbf16, #tpu.memory_space<vmem>>, vector<4x256xbf16>,
    %c0_27 = arith.constant 0 : index
    %c0_28 = arith.constant 0 : index
    %74 = vector.load %arg4[%c0_27, %c0_28] : memref<4x36xbf16, #tpu.memory_space<vmem>>, vector<4x36xbf16>
    %c0_29 = arith.constant 0 : index
    %c0_30 = arith.constant 0 : index
    %75 = vector.load %arg8[%c0_29, %c0_30] : memref<36x256xbf16, #tpu.memory_space<vmem>>, vector<36x256xbf16>
    %cst_31 = arith.constant dense<0.000000e+00> : vector<4x256xf32>
    %76 = tpu.matmul %74, %75, %cst_31 {dimension_numbers = #tpu.dot_dimension_numbers<[1], [0], [0], [1], [0, 0, 1, 1], [], []>} : vector<4x36xbf16>, vector<36x256xbf16>, vector<4x256xf32> -> vector<4x256xf32>
    %77 = vector.broadcast %5 : vector<4x1xf32> to vector<4x256xf32>
    %78 = arith.addf %76, %77 : vector<4x256xf32>
    %cst_32 = arith.constant 0.000000e+00 : f32
    %79 = vector.broadcast %cst_32 : f32 to vector<4x256xf32>
    %80 = arith.maximumf %78, %79 : vector<4x256xf32>
    %81 = arith.truncf %80 : vector<4x256xf32> to vector<4x256xbf16>
    %82 = tpu.concatenate %81, %0 in 0 : vector<4x256xbf16>, vector<4x256xbf16> -> vector<8x256xbf16>
    %c0_33 = arith.constant 0 : index
    %c0_34 = arith.constant 0 : index
    %83 = vector.load %arg5[%c0_33, %c0_34] : memref<8x8xbf16, #tpu.memory_space<vmem>>, vector<8x8xbf16>
    %cst_35 = arith.constant dense<0.000000e+00> : vector<8x256xf32>
    %84 = tpu.matmul %83, %82, %cst_35 {dimension_numbers = #tpu.dot_dimension_numbers<[1], [0], [0], [1], [0, 0, 1, 1], [], []>} : vector<8x8xbf16>, vector<8x256xbf16>, vector<8x256xf32> -> vector<8x256xf32>
    %85 = vector.broadcast %6 : vector<8x1xf32> to vector<8x256xf32>
    %86 = arith.addf %84, %85 : vector<8x256xf32>
    %87 = arith.truncf %86 : vector<8x256xf32> to vector<8x256xbf16>
    %c0_36 = arith.constant 0 : index
    %c0_37 = arith.constant 0 : index
    %88 = vector.load %arg7[%c0_36, %c0_37] : memref<8x256xbf16, #tpu.memory_space<vmem>>, vector<8x256xbf16>
    tpu.vector_store %arg7[%c0_36, %c0_37], %87 {strides = array<i32>} : memref<8x256xbf16, #tpu.memory_space<vmem>>, vector<8x256xbf16>,
    return
  }
  func.func @transform_0(%arg0: i32) -> (i32, i32) {
    %c0_i32 = arith.constant 0 : i32
    %c0_i32_0 = arith.constant 0 : i32
    return %c0_i32, %arg0 : i32, i32
  }
  func.func @transform_1(%arg0: i32) -> (i32, i32) {
    %c0_i32 = arith.constant 0 : i32
    %c0_i32_0 = arith.constant 0 : i32
    %c0_i32_1 = arith.constant 0 : i32
    return %c0_i32, %c0_i32_0 : i32, i32
  }
  func.func @transform_2(%arg0: i32) -> (i32, i32) {
    %c0_i32 = arith.constant 0 : i32
    %c0_i32_0 = arith.constant 0 : i32
    %c0_i32_1 = arith.constant 0 : i32
    return %c0_i32, %c0_i32_0 : i32, i32
  }
  func.func @transform_3(%arg0: i32) -> (i32, i32) {
    %c0_i32 = arith.constant 0 : i32
    %c0_i32_0 = arith.constant 0 : i32
    %c0_i32_1 = arith.constant 0 : i32
    return %c0_i32, %c0_i32_0 : i32, i32
  }
  func.func @transform_4(%arg0: i32) -> (i32, i32) {
    %c0_i32 = arith.constant 0 : i32
    %c0_i32_0 = arith.constant 0 : i32
    %c0_i32_1 = arith.constant 0 : i32
    return %c0_i32, %c0_i32_0 : i32, i32
  }
  func.func @transform_5(%arg0: i32) -> (i32, i32) {
    %c0_i32 = arith.constant 0 : i32
    %c0_i32_0 = arith.constant 0 : i32
    %c0_i32_1 = arith.constant 0 : i32
    return %c0_i32, %c0_i32_0 : i32, i32
  }
  func.func @transform_6(%arg0: i32) -> (i32, i32) {
    %c0_i32 = arith.constant 0 : i32
    %c0_i32_0 = arith.constant 0 : i32
    return %c0_i32, %arg0 : i32, i32
  }
}

</mosaic_0001>

<llo_original>
// kernel: tpu_custom_call.1
$region0: #{tpu_custom_call.1}
  #allocation0 [shape = 'u32[]', space=smem, size = 0x4, offset = 0x4, fixed_abs, tag = 'smem constant byte address 0x4 - core index']
  #allocation1 [shape = 'u32[144,128]{1,0:T(1,128)}', space=vmem, size = 0x12000, scoped, tag = 'internal scratch']
  #allocation2 [shape = 'bf16[36,256]{1,0:T(8,128)(2,1)}', space=vmem, size = 0x5000, scoped, tag = 'scratch operand']
  %s0 = inlined_call_operand.vmem [shape: bf16[4,512], index: 0, kind: input, shape index: {}]
  %s1 = inlined_call_operand.vmem [shape: f32[24,1], index: 1, kind: input, shape index: {}]
  %s2 = inlined_call_operand.vmem [shape: bf16[4,4], index: 2, kind: input, shape index: {}]
  %s3 = inlined_call_operand.hbm [shape: bf16[4,36], index: 3, kind: input, shape index: {}]
  %s4 = inlined_call_operand.hbm [shape: bf16[8,8], index: 4, kind: input, shape index: {}]
  %s5 = inlined_call_operand.vmem [shape: f32[9,256], index: 5, kind: input, shape index: {}]
  %s6 = inlined_call_operand.hbm [shape: bf16[8,512], index: 6, kind: output, shape index: {}]
  %s7 = sld [smem:[#allocation0]]
  $region65: #{tpu_custom_call.1} parent=0
    _
  %s9 = ssub.s32 1, %s7
  %s10 = scalar_select 0, %s9, %s7
  $region1: #{tpu_custom_call.1} parent=0
    #allocation3 [shape = 'u8[1024]{0}', space=vmem, size = 0x400, scoped, tag = 'input window, operand 3, single buffered']
    #allocation4 [shape = 's32[2]{0}', space=sflag, size = 0x8, scoped, tag = 'scoped memory for tpu_custom_call.1']
    #allocation5 [shape = 's32[2]{0}', space=sflag, size = 0x8, scoped, tag = 'scoped memory for tpu_custom_call.1']
    #allocation6 [shape = 'u8[2048]{0}', space=vmem, size = 0x800, scoped, tag = 'input window, operand 4, single buffered']
    #allocation7 [shape = 's32[1]{0}', space=sflag, size = 0x4, scoped, tag = 'scoped memory for tpu_custom_call.1']
    #allocation8 [shape = 'u8[8192]{0}', space=vmem, size = 0x2000, scoped, tag = 'output window, operand 0']
    %11 = vsyncpa [#allocation4], 0
    %12 = vsyncpa [#allocation7], 0
    %13 = vsyncpa [#allocation5], 0
    %s14 = scalar_lea.sflag [#allocation5], 1
    %15 = vsyncpa %s14, 0
    loop: start=0, step=1, limit=4
    $region2: #{tpu_custom_call.1} parent=1 // loop_pre_header
      _
    $region3: #{tpu_custom_call.1} parent=1 // loop_header
      %s17 = sphi 0, %s21
      %p18 = scmp.ge.s32.totalorder %s17, 4
      %s27 = sphi 0, %s29
      %s30 = sphi 0, %s27
      %s31 = sphi 0, %s30
      %s47 = sphi 0, %s31
      %s51 = sphi 0, %s51
      %s53 = sphi 0, %s51
      %s54 = sphi 0, %s53
      %s68 = sphi 0, %s54
      %s72 = sphi 0, %s72
      %s74 = sphi 0, %s72
      %s75 = sphi 0, %s74
      %s89 = sphi 0, %s75
      %s93 = sphi 0, %s93
      %s95 = sphi 0, %s93
      %s96 = sphi 0, %s95
      %s110 = sphi 0, %s96
      %s114 = sphi 0, %s114
      %s116 = sphi 0, %s114
      %s117 = sphi 0, %s116
      %s131 = sphi 0, %s117
      %s135 = sphi 0, %s135
      %s137 = sphi 0, %s135
      %s138 = sphi 0, %s137
      %s152 = sphi 0, %s138
      %s158 = sphi 0, %s160
      %s161 = sphi 0, %s158
      %s162 = sphi 0, %s161
      %s178 = sphi 0, %s162
    $region4: #{tpu_custom_call.1} parent=1 // loop_header_branch
      %20 = sbr.rel (%p18) target = $region8
    $region5: #{tpu_custom_call.1} parent=1 // loop_body
      %s22 = ssub.s32 %s17, 1
      %s23 = ssub.s32 %s17, 2
      %s24 = sadd.s32 %s17, 1
      %s25 = ssub.s32 %s17, %s24
      %p26 = scmp.eq.s32.totalorder %s25, 0
      %s28 = sadd.s32 %s27, 1
      %s29 = scalar_select %p26, %s27, %s28
      %p32 = pneg %p26
      %p33 = scmp.eq.s32.totalorder %s17, 1
      %p34 = por %p32, %p33
      %p35 = scmp.ne.s32.totalorder %s27, %s30
      %p36 = scmp.eq.s32.totalorder %s17, 0
      %p37 = por %p35, %p36
      %p38 = scmp.ne.s32.totalorder %s27, %s30
      %p39 = scmp.eq.s32.totalorder %s22, 1
      %p40 = por %p38, %p39
      %p41 = scmp.ne.s32.totalorder %s30, %s31
      %p42 = scmp.eq.s32.totalorder %s22, 0
      %p43 = por %p41, %p42
      %p44 = scmp.ne.s32.totalorder %s30, %s31
      %p45 = scmp.eq.s32.totalorder %s23, 1
      %p46 = por %p44, %p45
      %p48 = scmp.ne.s32.totalorder %s31, %s47
      %p49 = scmp.eq.s32.totalorder %s23, 0
      %p50 = por %p48, %p49
      %s52 = sadd.s32 %s51, 1
      %p55 = scmp.eq.s32.totalorder %s17, 1
      %p56 = scmp.ne.s32.totalorder %s51, %s53
      %p57 = scmp.eq.s32.totalorder %s17, 0
      %p58 = por %p56, %p57
      %p59 = scmp.ne.s32.totalorder %s51, %s53
      %p60 = scmp.eq.s32.totalorder %s22, 1
      %p61 = por %p59, %p60
      %p62 = scmp.ne.s32.totalorder %s53, %s54
      %p63 = scmp.eq.s32.totalorder %s22, 0
      %p64 = por %p62, %p63
      %p65 = scmp.ne.s32.totalorder %s53, %s54
      %p66 = scmp.eq.s32.totalorder %s23, 1
      %p67 = por %p65, %p66
      %p69 = scmp.ne.s32.totalorder %s54, %s68
      %p70 = scmp.eq.s32.totalorder %s23, 0
      %p71 = por %p69, %p70
      %s73 = sadd.s32 %s72, 1
      %p76 = scmp.eq.s32.totalorder %s17, 1
      %p77 = scmp.ne.s32.totalorder %s72, %s74
      %p78 = scmp.eq.s32.totalorder %s17, 0
      %p79 = por %p77, %p78
      %p80 = scmp.ne.s32.totalorder %s72, %s74
      %p81 = scmp.eq.s32.totalorder %s22, 1
      %p82 = por %p80, %p81
      %p83 = scmp.ne.s32.totalorder %s74, %s75
      %p84 = scmp.eq.s32.totalorder %s22, 0
      %p85 = por %p83, %p84
      %p86 = scmp.ne.s32.totalorder %s74, %s75
      %p87 = scmp.eq.s32.totalorder %s23, 1
      %p88 = por %p86, %p87
      %p90 = scmp.ne.s32.totalorder %s75, %s89
      %p91 = scmp.eq.s32.totalorder %s23, 0
      %p92 = por %p90, %p91
      %s94 = sadd.s32 %s93, 1
      %p97 = scmp.eq.s32.totalorder %s17, 1
      %p98 = scmp.ne.s32.totalorder %s93, %s95
      %p99 = scmp.eq.s32.totalorder %s17, 0
      %p100 = por %p98, %p99
      %p101 = scmp.ne.s32.totalorder %s93, %s95
      %p102 = scmp.eq.s32.totalorder %s22, 1
      %p103 = por %p101, %p102
      %p104 = scmp.ne.s32.totalorder %s95, %s96
      %p105 = scmp.eq.s32.totalorder %s22, 0
      %p106 = por %p104, %p105
      %p107 = scmp.ne.s32.totalorder %s95, %s96
      %p108 = scmp.eq.s32.totalorder %s23, 1
      %p109 = por %p107, %p108
      %p111 = scmp.ne.s32.totalorder %s96, %s110
      %p112 = scmp.eq.s32.totalorder %s23, 0
      %p113 = por %p111, %p112
      %s115 = sadd.s32 %s114, 1
      %p118 = scmp.eq.s32.totalorder %s17, 1
      %p119 = scmp.ne.s32.totalorder %s114, %s116
      %p120 = scmp.eq.s32.totalorder %s17, 0
      %p121 = por %p119, %p120
      %p122 = scmp.ne.s32.totalorder %s114, %s116
      %p123 = scmp.eq.s32.totalorder %s22, 1
      %p124 = por %p122, %p123
      %p125 = scmp.ne.s32.totalorder %s116, %s117
      %p126 = scmp.eq.s32.totalorder %s22, 0
      %p127 = por %p125, %p126
      %p128 = scmp.ne.s32.totalorder %s116, %s117
      %p129 = scmp.eq.s32.totalorder %s23, 1
      %p130 = por %p128, %p129
      %p132 = scmp.ne.s32.totalorder %s117, %s131
      %p133 = scmp.eq.s32.totalorder %s23, 0
      %p134 = por %p132, %p133
      %s136 = sadd.s32 %s135, 1
      %p139 = scmp.eq.s32.totalorder %s17, 1
      %p140 = scmp.ne.s32.totalorder %s135, %s137
      %p141 = scmp.eq.s32.totalorder %s17, 0
      %p142 = por %p140, %p141
      %p143 = scmp.ne.s32.totalorder %s135, %s137
      %p144 = scmp.eq.s32.totalorder %s22, 1
      %p145 = por %p143, %p144
      %p146 = scmp.ne.s32.totalorder %s137, %s138
      %p147 = scmp.eq.s32.totalorder %s22, 0
      %p148 = por %p146, %p147
      %p149 = scmp.ne.s32.totalorder %s137, %s138
      %p150 = scmp.eq.s32.totalorder %s23, 1
      %p151 = por %p149, %p150
      %p153 = scmp.ne.s32.totalorder %s138, %s152
      %p154 = scmp.eq.s32.totalorder %s23, 0
      %p155 = por %p153, %p154
      %s156 = ssub.s32 %s17, %s24
      %p157 = scmp.eq.s32.totalorder %s156, 0
      %s159 = sadd.s32 %s158, 1
      %s160 = scalar_select %p157, %s158, %s159
      %p163 = pneg %p157
      %p164 = scmp.eq.s32.totalorder %s17, 1
      %p165 = por %p163, %p164
      %p166 = scmp.ne.s32.totalorder %s158, %s161
      %p167 = scmp.eq.s32.totalorder %s17, 0
      %p168 = por %p166, %p167
      %p169 = scmp.ne.s32.totalorder %s158, %s161
      %p170 = scmp.eq.s32.totalorder %s22, 1
      %p171 = por %p169, %p170
      %p172 = scmp.ne.s32.totalorder %s161, %s162
      %p173 = scmp.eq.s32.totalorder %s22, 0
      %p174 = por %p172, %p173
      %p175 = scmp.ne.s32.totalorder %s161, %s162
      %p176 = scmp.eq.s32.totalorder %s23, 1
      %p177 = por %p175, %p176
      %p179 = scmp.ne.s32.totalorder %s162, %s178
      %p180 = scmp.eq.s32.totalorder %s23, 0
      %p181 = por %p179, %p180
      %p182 = scmp.le.s32.totalorder 1, %s17
      %p183 = scmp.lt.s32.totalorder %s17, 3
      %p184 = pnand %p182, %p183
      %p185 = pneg %p184
      // Predicated region
      $region9: #{tpu_custom_call.1} parent=5 // pred_check
        _
      $region10: #{tpu_custom_call.1} parent=5 // pred_check_branch
        %187 = sbr.rel (%p184) target = $region12
      $region11: #{tpu_custom_call.1} parent=5 // pred_region
        %s188 = ssub.s32 %s17, 1
        // Predicated region
        $region13: #{tpu_custom_call.1} parent=11 // pred_check
          %p189 = pneg %p64
        $region14: #{tpu_custom_call.1} parent=11 // pred_check_branch
          %191 = sbr.rel (%p189) target = $region16
        $region15: #{tpu_custom_call.1} parent=11 // pred_region
          _
        $region16: #{tpu_custom_call.1} parent=11 // pred_fallthru
          _
        // Predicated region
        $region17: #{tpu_custom_call.1} parent=11 // pred_check
          %p192 = pneg %p85
        $region18: #{tpu_custom_call.1} parent=11 // pred_check_branch
          %194 = sbr.rel (%p192) target = $region20
        $region19: #{tpu_custom_call.1} parent=11 // pred_region
          _
        $region20: #{tpu_custom_call.1} parent=11 // pred_fallthru
          _
        // Predicated region
        $region21: #{tpu_custom_call.1} parent=11 // pred_check
          %p195 = pneg %p106
        $region22: #{tpu_custom_call.1} parent=11 // pred_check_branch
          %197 = sbr.rel (%p195) target = $region24
        $region23: #{tpu_custom_call.1} parent=11 // pred_region
          %s199 = ssub.s32 32, 32
          %200 = vsyncadd [#allocation4], %s199
          %s202 = sshll.u32 [#allocation3], 4
          %s203 = int_to_ptr.vmem [resolvable:$true] %s202
          %205 = dma.hbm_to_vmem [thread:$0]  %s3, 32, %s203, [#allocation4]
        $region24: #{tpu_custom_call.1} parent=11 // pred_fallthru
          _
        // Predicated region
        $region25: #{tpu_custom_call.1} parent=11 // pred_check
          %p206 = pneg %p127
        $region26: #{tpu_custom_call.1} parent=11 // pred_check_branch
          %208 = sbr.rel (%p206) target = $region28
        $region27: #{tpu_custom_call.1} parent=11 // pred_region
          %s210 = ssub.s32 64, 64
          %211 = vsyncadd [#allocation7], %s210
          %s213 = sshll.u32 [#allocation6], 4
          %s214 = int_to_ptr.vmem [resolvable:$true] %s213
          %216 = dma.hbm_to_vmem [thread:$0]  %s4, 64, %s214, [#allocation7]
        $region28: #{tpu_custom_call.1} parent=11 // pred_fallthru
          _
        // Predicated region
        $region29: #{tpu_custom_call.1} parent=11 // pred_check
          %p217 = pneg %p148
        $region30: #{tpu_custom_call.1} parent=11 // pred_check_branch
          %219 = sbr.rel (%p217) target = $region32
        $region31: #{tpu_custom_call.1} parent=11 // pred_region
          _
        $region32: #{tpu_custom_call.1} parent=11 // pred_fallthru
          _
      $region12: #{tpu_custom_call.1} parent=5 // pred_fallthru
        _
      %p220 = scmp.lt.s32.totalorder %s17, 2
      // Predicated region
      $region33: #{tpu_custom_call.1} parent=5 // pred_check
        %p221 = pneg %p220
      $region34: #{tpu_custom_call.1} parent=5 // pred_check_branch
        %223 = sbr.rel (%p221) target = $region36
      $region35: #{tpu_custom_call.1} parent=5 // pred_region
        // Predicated region
        $region37: #{tpu_custom_call.1} parent=35 // pred_check
          %p224 = pneg %p37
        $region38: #{tpu_custom_call.1} parent=35 // pred_check_branch
          %226 = sbr.rel (%p224) target = $region40
        $region39: #{tpu_custom_call.1} parent=35 // pred_region
          %s227 = smul.u32 2, %s17
          %p228 = scmp.lt.s32.totalorder %s227, 3
          %s229 = scalar_select %p228, %s227, 3
          %s230 = smul.addr %s229, 2
          %s231 = scalar_lea.vmem %s0, %s230
          %s232 = smul.u32 2, %s17
        $region40: #{tpu_custom_call.1} parent=35 // pred_fallthru
          _
      $region36: #{tpu_custom_call.1} parent=5 // pred_fallthru
        _
      %p233 = scmp.le.s32.totalorder 1, %s17
      %p234 = scmp.lt.s32.totalorder %s17, 3
      %p235 = pnand %p233, %p234
      %p236 = pneg %p235
      // Predicated region
      $region41: #{tpu_custom_call.1} parent=5 // pred_check
        _
      $region42: #{tpu_custom_call.1} parent=5 // pred_check_branch
        %238 = sbr.rel (%p235) target = $region44
      $region43: #{tpu_custom_call.1} parent=5 // pred_region
        %s239 = ssub.s32 %s17, 1
        // Predicated region
        $region45: #{tpu_custom_call.1} parent=43 // pred_check
          %p240 = pneg %p106
        $region46: #{tpu_custom_call.1} parent=43 // pred_check_branch
          %242 = sbr.rel (%p240) target = $region48
        $region47: #{tpu_custom_call.1} parent=43 // pred_region
          %243 = dma.done [#allocation4], 32
        $region48: #{tpu_custom_call.1} parent=43 // pred_fallthru
          _
        // Predicated region
        $region49: #{tpu_custom_call.1} parent=43 // pred_check
          %p244 = pneg %p127
        $region50: #{tpu_custom_call.1} parent=43 // pred_check_branch
          %246 = sbr.rel (%p244) target = $region52
        $region51: #{tpu_custom_call.1} parent=43 // pred_region
          %247 = dma.done [#allocation7], 64
        $region52: #{tpu_custom_call.1} parent=43 // pred_fallthru
          _
        %s248 = smul.u32 2, %s22
        %p249 = scmp.lt.s32.totalorder %s248, 3
        %s250 = scalar_select %p249, %s248, 3
        %s251 = smul.addr %s250, 2
        %s252 = scalar_lea.vmem %s0, %s251
        %p253 = pneg %p43
        %p254 = pneg %p40
        %p255 = pneg %p64
        %p256 = pneg %p61
        %p257 = pneg %p85
        %p258 = pneg %p82
        %p259 = pneg %p106
        %p260 = pneg %p103
        %p261 = pneg %p127
        %p262 = pneg %p124
        %p263 = pneg %p148
        %p264 = pneg %p145
        %p265 = pneg %p174
        %p266 = pneg %p171
        %s267 = sand.u32 %s161, 1
        %s268 = scalar_lea.sflag [#allocation5], %s267
        %s269 = sand.u32 %s161, 1
        %s270 = smul.addr %s269, 8
        %s271 = scalar_lea.vmem [#allocation8], %s270
        %s272 = smul.u32 2, %s22
        %p273 = scmp.lt.s32.totalorder %s272, 3
        %s274 = scalar_select %p273, %s272, 3
        %s275 = smul.addr %s274, 2
        %s276 = scalar_lea.vmem %s0, %s275
        %s277 = smul.u32 2, %s22
        %s278 = smul.u32 2, %s22
        %v280 = vld [vmem:[%s276] sm:$0xf]
        %v281 = vunpack.c.l.bf16 %v280
        %v282 = vld [vmem:[%s1] sm:$0xf]
        %v283 = vld [vmem:[%s1 + $0x4] sm:$0xf]
        %v284 = vld [vmem:[%s1 + $0x8] sm:$0xf]
        %v285 = vld [vmem:[%s1 + $0xc] sm:$0xf]
        %v286 = vld [vmem:[%s1 + $0x10] sm:$0xff]
        %288 = vset.pattern.permute.xlu0 0
        %289 = vperm.xlu0 %288, %v282
        %v290 = vpop.permute.xlu0 %289
        %v292 = vunpack.c.l.s4 839922192
        %v293 = vunpack.c.0.s8 %v292
        %v294 = vlaneseq
        %v295 = vshrl.u32 %v294, 7
        %v296 = vsub.s32 %v293, %v295
        %v297 = vrot.slane %v290, %v296
        %v299 = vmul.f32 %v281, %v297
        %301 = vset.pattern.permute.xlu0 0
        %302 = vperm.xlu0 %301, %v283
        %v303 = vpop.permute.xlu0 %302
        %v305 = vunpack.c.l.s4 839922192
        %v306 = vunpack.c.0.s8 %v305
        %v307 = vlaneseq
        %v308 = vshrl.u32 %v307, 7
        %v309 = vsub.s32 %v306, %v308
        %v310 = vrot.slane %v303, %v309
        %v312 = vadd.f32 %v299, %v310
        %v313 = vmax.f32 %v312, 0.0
        %v315 = vcombine.high %v313, %v313
        %v317 = vpack.c.bf16 %v313, %v313
        %v318 = vpack.c.bf16 %v315, %v315
        %v319 = vld [vmem:[%s2] sm:$0x3]
        %321 = vset.pattern.permute.xlu0 0
        %322 = vperm.xlu0 %321, %v284
        %v323 = vpop.permute.xlu0 %322
        %vm325 = vcmask 31744
        %v327 = vsel %vm325, %v319, 0
        %vm329 = vcmask 1041408
        %v331 = vsel %vm329, %v317, 0
        %v334 = vsel %vm329, %v318, 0
        %336 = vmatprep.subr.bf16.mxu0 %v334
        %337 = vmatpush1.bf16.msra.mxu0 %v331
        %338 = vmatprep.subr.bf16.mxu0 0
        %339 = vmatpush1.bf16.msra.mxu0 0
        %340 = vmatprep.subr.bf16.mxu0 0
        %341 = vmatpush1.bf16.msra.mxu0 0
        %342 = vmatprep.subr.bf16.mxu0 0
        %343 = vmatpush1.bf16.msra.mxu0 0
        %344 = vmatprep.subr.bf16.mxu0 0
        %345 = vmatpush1.bf16.msra.mxu0 0
        %346 = vmatprep.subr.bf16.mxu0 0
        %347 = vmatpush1.bf16.msra.mxu0 0
        %348 = vmatprep.subr.bf16.mxu0 0
        %349 = vmatpush1.bf16.msra.mxu0 0
        %350 = vmatprep.subr.bf16.mxu0 0
        %351 = vmatpush1.bf16.msra.mxu0 0
        %352 = vmatprep.subr.bf16.mxu0 0
        %353 = vmatpush1.bf16.msra.mxu0 0
        %354 = vmatprep.subr.bf16.mxu0 0
        %355 = vmatpush1.bf16.msra.mxu0 0
        %356 = vmatprep.subr.bf16.mxu0 0
        %357 = vmatpush1.bf16.msra.mxu0 0
        %358 = vmatprep.subr.bf16.mxu0 0
        %359 = vmatpush1.bf16.msra.mxu0 0
        %360 = vmatprep.subr.bf16.mxu0 0
        %361 = vmatpush1.bf16.msra.mxu0 0
        %362 = vmatprep.subr.bf16.mxu0 0
        %363 = vmatpush1.bf16.msra.mxu0 0
        %364 = vmatprep.subr.bf16.mxu0 0
        %365 = vmatpush1.bf16.msra.mxu0 0
        %366 = vmatprep.subr.bf16.mxu0 0
        %367 = vmatpush1.bf16.msra.mxu0 0
        %368 = vmatprep.mubr.bf16.mxu0 0
        %369 = vmatmul.mubr.bf16.gmra.mrb[0].mxu0 %v327
        %v370 = vpop.f32.mrb[0].mxu0
        %v371 = vadd.f32 %v323, %v370
        %v372 = vpop.f32.mrb[0].mxu0
        %v373 = vadd.f32 %v323, %v372
        %v374 = vpop.f32.mrb[0].mxu0
        %v375 = vpop.f32.mrb[0].mxu0
        %376 = vdwg.mxu0
        %v377 = vmax.f32 %v371, 0.0
        %v378 = vmax.f32 %v373, 0.0
        %v379 = vld [vmem:[%s5] sm:$0xff]
        %v380 = vld [vmem:[%s5 + $0x8] sm:$0xff]
        %v381 = vld [vmem:[%s5 + $0x10] sm:$0x1]
        %v382 = vld [vmem:[%s5 + $0x18] sm:$0x1]
        %383 = vrot.lane.b32.xlu0 %v377, 17
        %v384 = vpop.permute.xlu0 %383
        %385 = vrot.lane.b32.xlu0 %v378, 17
        %v386 = vpop.permute.xlu0 %385
        %v387 = vlaneseq
        %v388 = vand.u32 %v387, 127
        %vm389 = vcmp.lt.s32.totalorder %v388, 17
        %v390 = vsel %vm389, %v384, %v386
        %v391 = vsel %vm389, %v386, %v384
        %v392 = vlaneseq
        %v393 = vshrl.u32 %v392, 7
        %v394 = vsub.s32 0, %v393
        %v395 = vrot.slane %v379, %v394
        %v396 = vlaneseq
        %v397 = vshrl.u32 %v396, 7
        %v398 = vsub.s32 0, %v397
        %v399 = vrot.slane %v380, %v398
        %v400 = vmul.f32 %v391, %v395
        %v401 = vmul.f32 %v390, %v399
        %v402 = vpack.c.bf16 %v400, %v400
        %v403 = vpack.c.bf16 %v401, %v401
        %v406 = vunpack.c.l.b16 %v402
        %v407 = vunpack.c.l.b16 %v403
        %v408 = vpack.c.b16 %v407, %v406
        %410 = vst [vmem:[#allocation2] sm:$0x33] %v408
        %411 = vrot.lane.b32.xlu0 %v377, 16
        %v412 = vpop.permute.xlu0 %411
        %413 = vrot.lane.b32.xlu0 %v378, 16
        %v414 = vpop.permute.xlu0 %413
        %vm415 = vcmp.lt.s32.totalorder %v388, 16
        %v416 = vsel %vm415, %v412, %v414
        %v417 = vsel %vm415, %v414, %v412
        %v418 = vlaneseq
        %v419 = vshrl.u32 %v418, 7
        %v420 = vsub.s32 1, %v419
        %v421 = vrot.slane %v379, %v420
        %v422 = vlaneseq
        %v423 = vshrl.u32 %v422, 7
        %v424 = vsub.s32 1, %v423
        %v425 = vrot.slane %v380, %v424
        %v426 = vmul.f32 %v417, %v421
        %v427 = vmul.f32 %v416, %v425
        %v428 = vpack.c.bf16 %v426, %v426
        %v429 = vpack.c.bf16 %v427, %v427
        %v432 = vunpack.c.l.b16 %v428
        %v433 = vunpack.c.l.b16 %v429
        %v434 = vpack.c.b16 %v433, %v432
        %v435 = vrot.slane %v434, 6
        %437 = vst [vmem:[#allocation2] sm:$0xcc] %v435
        %438 = vrot.lane.b32.xlu0 %v377, 15
        %v439 = vpop.permute.xlu0 %438
        %440 = vrot.lane.b32.xlu0 %v378, 15
        %v441 = vpop.permute.xlu0 %440
        %vm442 = vcmp.lt.s32.totalorder %v388, 15
        %v443 = vsel %vm442, %v439, %v441
        %v444 = vsel %vm442, %v441, %v439
        %v445 = vlaneseq
        %v446 = vshrl.u32 %v445, 7
        %v447 = vsub.s32 2, %v446
        %v448 = vrot.slane %v379, %v447
        %v449 = vlaneseq
        %v450 = vshrl.u32 %v449, 7
        %v451 = vsub.s32 2, %v450
        %v452 = vrot.slane %v380, %v451
        %v453 = vmul.f32 %v444, %v448
        %v454 = vmul.f32 %v443, %v452
        %v455 = vpack.c.bf16 %v453, %v453
        %v456 = vpack.c.bf16 %v454, %v454
        %v459 = vunpack.c.l.b16 %v455
        %v460 = vunpack.c.l.b16 %v456
        %v461 = vpack.c.b16 %v460, %v459
        %463 = vst [vmem:[#allocation2 + $0x8] sm:$0x33] %v461
        %464 = vrot.lane.b32.xlu0 %v377, 1
        %v465 = vpop.permute.xlu0 %464
        %466 = vrot.lane.b32.xlu0 %v378, 1
        %v467 = vpop.permute.xlu0 %466
        %vm468 = vcmp.lt.s32.totalorder %v388, 1
        %v469 = vsel %vm468, %v465, %v467
        %v470 = vsel %vm468, %v467, %v465
        %v471 = vlaneseq
        %v472 = vshrl.u32 %v471, 7
        %v473 = vsub.s32 3, %v472
        %v474 = vrot.slane %v379, %v473
        %v475 = vlaneseq
        %v476 = vshrl.u32 %v475, 7
        %v477 = vsub.s32 3, %v476
        %v478 = vrot.slane %v380, %v477
        %v479 = vmul.f32 %v470, %v474
        %v480 = vmul.f32 %v469, %v478
        %v481 = vpack.c.bf16 %v479, %v479
        %v482 = vpack.c.bf16 %v480, %v480
        %v485 = vunpack.c.l.b16 %v481
        %v486 = vunpack.c.l.b16 %v482
        %v487 = vpack.c.b16 %v486, %v485
        %v488 = vrot.slane %v487, 6
        %490 = vst [vmem:[#allocation2 + $0x8] sm:$0xcc] %v488
        %v491 = vlaneseq
        %v492 = vshrl.u32 %v491, 7
        %v493 = vsub.s32 4, %v492
        %v494 = vrot.slane %v379, %v493
        %v495 = vlaneseq
        %v496 = vshrl.u32 %v495, 7
        %v497 = vsub.s32 4, %v496
        %v498 = vrot.slane %v380, %v497
        %v499 = vmul.f32 %v377, %v494
        %v500 = vmul.f32 %v378, %v498
        %v501 = vpack.c.bf16 %v499, %v499
        %v502 = vpack.c.bf16 %v500, %v500
        %v505 = vunpack.c.l.b16 %v501
        %v506 = vunpack.c.l.b16 %v502
        %v507 = vpack.c.b16 %v506, %v505
        %509 = vst [vmem:[#allocation2 + $0x10] sm:$0x33] %v507
        %510 = vrot.lane.b32.xlu0 %v377, 127
        %v511 = vpop.permute.xlu0 %510
        %512 = vrot.lane.b32.xlu0 %v378, 127
        %v513 = vpop.permute.xlu0 %512
        %vm514 = vcmp.lt.s32.totalorder %v388, 127
        %v515 = vsel %vm514, %v511, %v513
        %v516 = vsel %vm514, %v513, %v511
        %v517 = vlaneseq
        %v518 = vshrl.u32 %v517, 7
        %v519 = vsub.s32 5, %v518
        %v520 = vrot.slane %v379, %v519
        %v521 = vlaneseq
        %v522 = vshrl.u32 %v521, 7
        %v523 = vsub.s32 5, %v522
        %v524 = vrot.slane %v380, %v523
        %v525 = vmul.f32 %v515, %v520
        %v526 = vmul.f32 %v516, %v524
        %v527 = vpack.c.bf16 %v525, %v525
        %v528 = vpack.c.bf16 %v526, %v526
        %v531 = vunpack.c.l.b16 %v527
        %v532 = vunpack.c.l.b16 %v528
        %v533 = vpack.c.b16 %v532, %v531
        %v534 = vrot.slane %v533, 6
        %536 = vst [vmem:[#allocation2 + $0x10] sm:$0xcc] %v534
        %537 = vrot.lane.b32.xlu0 %v377, 113
        %v538 = vpop.permute.xlu0 %537
        %539 = vrot.lane.b32.xlu0 %v378, 113
        %v540 = vpop.permute.xlu0 %539
        %vm541 = vcmp.lt.s32.totalorder %v388, 113
        %v542 = vsel %vm541, %v538, %v540
        %v543 = vsel %vm541, %v540, %v538
        %v544 = vlaneseq
        %v545 = vshrl.u32 %v544, 7
        %v546 = vsub.s32 6, %v545
        %v547 = vrot.slane %v379, %v546
        %v548 = vlaneseq
        %v549 = vshrl.u32 %v548, 7
        %v550 = vsub.s32 6, %v549
        %v551 = vrot.slane %v380, %v550
        %v552 = vmul.f32 %v542, %v547
        %v553 = vmul.f32 %v543, %v551
        %v554 = vpack.c.bf16 %v552, %v552
        %v555 = vpack.c.bf16 %v553, %v553
        %v558 = vunpack.c.l.b16 %v554
        %v559 = vunpack.c.l.b16 %v555
        %v560 = vpack.c.b16 %v559, %v558
        %562 = vst [vmem:[#allocation2 + $0x18] sm:$0x33] %v560
        %563 = vrot.lane.b32.xlu0 %v377, 112
        %v564 = vpop.permute.xlu0 %563
        %565 = vrot.lane.b32.xlu0 %v378, 112
        %v566 = vpop.permute.xlu0 %565
        %vm567 = vcmp.lt.s32.totalorder %v388, 112
        %v568 = vsel %vm567, %v564, %v566
        %v569 = vsel %vm567, %v566, %v564
        %v570 = vlaneseq
        %v571 = vshrl.u32 %v570, 7
        %v572 = vsub.s32 7, %v571
        %v573 = vrot.slane %v379, %v572
        %v574 = vlaneseq
        %v575 = vshrl.u32 %v574, 7
        %v576 = vsub.s32 7, %v575
        %v577 = vrot.slane %v380, %v576
        %v578 = vmul.f32 %v568, %v573
        %v579 = vmul.f32 %v569, %v577
        %v580 = vpack.c.bf16 %v578, %v578
        %v581 = vpack.c.bf16 %v579, %v579
        %v584 = vunpack.c.l.b16 %v580
        %v585 = vunpack.c.l.b16 %v581
        %v586 = vpack.c.b16 %v585, %v584
        %v587 = vrot.slane %v586, 6
        %589 = vst [vmem:[#allocation2 + $0x18] sm:$0xcc] %v587
        %590 = vrot.lane.b32.xlu0 %v377, 111
        %v591 = vpop.permute.xlu0 %590
        %592 = vrot.lane.b32.xlu0 %v378, 111
        %v593 = vpop.permute.xlu0 %592
        %vm594 = vcmp.lt.s32.totalorder %v388, 111
        %v595 = vsel %vm594, %v591, %v593
        %v596 = vsel %vm594, %v593, %v591
        %v597 = vlaneseq
        %v598 = vshrl.u32 %v597, 7
        %v599 = vsub.s32 0, %v598
        %v600 = vrot.slane %v381, %v599
        %v601 = vlaneseq
        %v602 = vshrl.u32 %v601, 7
        %v603 = vsub.s32 0, %v602
        %v604 = vrot.slane %v382, %v603
        %v605 = vmul.f32 %v595, %v600
        %v606 = vmul.f32 %v596, %v604
        %v607 = vpack.c.bf16 %v605, %v605
        %v608 = vpack.c.bf16 %v606, %v606
        %v611 = vunpack.c.l.b16 %v607
        %v612 = vunpack.c.l.b16 %v608
        %v613 = vpack.c.b16 %v612, %v611
        %615 = vst [vmem:[#allocation2 + $0x20] sm:$0x33] %v613
        %v616 = vld [vmem:[#allocation3] sm:$0x3]
        %v617 = vld [vmem:[#allocation2] sm:$0xff]
        %v618 = vld [vmem:[#allocation2 + $0x8] sm:$0xff]
        %v619 = vld [vmem:[#allocation2 + $0x10] sm:$0xff]
        %v620 = vld [vmem:[#allocation2 + $0x18] sm:$0xff]
        %v621 = vld [vmem:[#allocation2 + $0x20] sm:$0x33]
        %623 = vset.pattern.permute.xlu0 0
        %624 = vperm.xlu0 %623, %v285
        %v625 = vpop.permute.xlu0 %624
        %v632 = vunpack.c.l.b16 %v617
        %v633 = vunpack.c.h.b16 %v617
        %v634 = vunpack.c.l.b16 %v618
        %v635 = vunpack.c.h.b16 %v618
        %v636 = vunpack.c.l.b16 %v619
        %v637 = vunpack.c.h.b16 %v619
        %v638 = vunpack.c.l.b16 %v620
        %v639 = vunpack.c.h.b16 %v620
        %v640 = vunpack.c.l.b16 %v621
        %v641 = vunpack.c.h.b16 %v621
        %v642 = vpack.c.b16 %v634, %v632
        %v643 = vpack.c.b16 %v635, %v633
        %v644 = vpack.c.b16 %v638, %v636
        %v645 = vpack.c.b16 %v639, %v637
        %v646 = vpack.c.b16 %v640, %v640
        %v647 = vpack.c.b16 %v641, %v641
        %vm652 = vcmask 293888
        %v654 = vsel %vm652, %v616, 0
        %v657 = vsel %vm329, %v646, 0
        %v660 = vsel %vm329, %v647, 0
        %662 = vmatprep.subr.bf16.mxu0 %v643
        %663 = vmatpush1.bf16.msra.mxu0 %v642
        %664 = vmatprep.subr.bf16.mxu0 %v645
        %665 = vmatpush1.bf16.msra.mxu0 %v644
        %666 = vmatprep.subr.bf16.mxu0 %v660
        %667 = vmatpush1.bf16.msra.mxu0 %v657
        %668 = vmatprep.subr.bf16.mxu0 0
        %669 = vmatpush1.bf16.msra.mxu0 0
        %670 = vmatprep.subr.bf16.mxu0 0
        %671 = vmatpush1.bf16.msra.mxu0 0
        %672 = vmatprep.subr.bf16.mxu0 0
        %673 = vmatpush1.bf16.msra.mxu0 0
        %674 = vmatprep.subr.bf16.mxu0 0
        %675 = vmatpush1.bf16.msra.mxu0 0
        %676 = vmatprep.subr.bf16.mxu0 0
        %677 = vmatpush1.bf16.msra.mxu0 0
        %678 = vmatprep.subr.bf16.mxu0 0
        %679 = vmatpush1.bf16.msra.mxu0 0
        %680 = vmatprep.subr.bf16.mxu0 0
        %681 = vmatpush1.bf16.msra.mxu0 0
        %682 = vmatprep.subr.bf16.mxu0 0
        %683 = vmatpush1.bf16.msra.mxu0 0
        %684 = vmatprep.subr.bf16.mxu0 0
        %685 = vmatpush1.bf16.msra.mxu0 0
        %686 = vmatprep.subr.bf16.mxu0 0
        %687 = vmatpush1.bf16.msra.mxu0 0
        %688 = vmatprep.subr.bf16.mxu0 0
        %689 = vmatpush1.bf16.msra.mxu0 0
        %690 = vmatprep.subr.bf16.mxu0 0
        %691 = vmatpush1.bf16.msra.mxu0 0
        %692 = vmatprep.subr.bf16.mxu0 0
        %693 = vmatpush1.bf16.msra.mxu0 0
        %694 = vmatprep.mubr.bf16.mxu0 0
        %695 = vmatmul.mubr.bf16.gmra.mrb[0].mxu0 %v654
        %v696 = vpop.f32.mrb[0].mxu0
        %v697 = vadd.f32 %v625, %v696
        %v698 = vpop.f32.mrb[0].mxu0
        %v699 = vadd.f32 %v625, %v698
        %v700 = vpop.f32.mrb[0].mxu0
        %v701 = vpop.f32.mrb[0].mxu0
        %702 = vdwg.mxu0
        %v703 = vmax.f32 %v697, 0.0
        %v704 = vmax.f32 %v699, 0.0
        %v705 = vpack.c.bf16 %v703, %v703
        %v706 = vpack.c.bf16 %v704, %v704
        %v708 = vcombine.low %v280, %v280
        %v710 = vunpack.c.l.s4 1983009808
        %v711 = vunpack.c.0.s8 %v710
        %v712 = vlaneseq
        %v713 = vshrl.u32 %v712, 7
        %v714 = vsub.s32 %v711, %v713
        %v715 = vrot.slane %v708, %v714
        %v716 = vcombine.high %v715, %v715
        %v719 = vsel %vm329, %v705, %v715
        %v722 = vsel %vm329, %v706, %v716
        %v723 = vld [vmem:[#allocation6] sm:$0xf]
        %725 = vset.pattern.permute.xlu0 0
        %726 = vperm.xlu0 %725, %v286
        %v727 = vpop.permute.xlu0 %726
        %vm729 = vcmask 64512
        %v731 = vsel %vm729, %v723, 0
        %vm733 = vcmask 1043456
        %v734 = vsel %vm733, %v719, 0
        %v736 = vsel %vm733, %v722, 0
        %738 = vmatprep.subr.bf16.mxu0 %v736
        %739 = vmatpush1.bf16.msra.mxu0 %v734
        %740 = vmatprep.subr.bf16.mxu0 0
        %741 = vmatpush1.bf16.msra.mxu0 0
        %742 = vmatprep.subr.bf16.mxu0 0
        %743 = vmatpush1.bf16.msra.mxu0 0
        %744 = vmatprep.subr.bf16.mxu0 0
        %745 = vmatpush1.bf16.msra.mxu0 0
        %746 = vmatprep.subr.bf16.mxu0 0
        %747 = vmatpush1.bf16.msra.mxu0 0
        %748 = vmatprep.subr.bf16.mxu0 0
        %749 = vmatpush1.bf16.msra.mxu0 0
        %750 = vmatprep.subr.bf16.mxu0 0
        %751 = vmatpush1.bf16.msra.mxu0 0
        %752 = vmatprep.subr.bf16.mxu0 0
        %753 = vmatpush1.bf16.msra.mxu0 0
        %754 = vmatprep.subr.bf16.mxu0 0
        %755 = vmatpush1.bf16.msra.mxu0 0
        %756 = vmatprep.subr.bf16.mxu0 0
        %757 = vmatpush1.bf16.msra.mxu0 0
        %758 = vmatprep.subr.bf16.mxu0 0
        %759 = vmatpush1.bf16.msra.mxu0 0
        %760 = vmatprep.subr.bf16.mxu0 0
        %761 = vmatpush1.bf16.msra.mxu0 0
        %762 = vmatprep.subr.bf16.mxu0 0
        %763 = vmatpush1.bf16.msra.mxu0 0
        %764 = vmatprep.subr.bf16.mxu0 0
        %765 = vmatpush1.bf16.msra.mxu0 0
        %766 = vmatprep.subr.bf16.mxu0 0
        %767 = vmatpush1.bf16.msra.mxu0 0
        %768 = vmatprep.subr.bf16.mxu0 0
        %769 = vmatpush1.bf16.msra.mxu0 0
        %770 = vmatprep.mubr.bf16.mxu0 0
        %771 = vmatmul.mubr.bf16.gmra.mrb[0].mxu0 %v731
        %v772 = vpop.f32.mrb[0].mxu0
        %v773 = vadd.f32 %v727, %v772
        %v774 = vpop.f32.mrb[0].mxu0
        %v775 = vadd.f32 %v727, %v774
        %v776 = vpop.f32.mrb[0].mxu0
        %v777 = vpop.f32.mrb[0].mxu0
        %778 = vdwg.mxu0
        %v779 = vpack.c.bf16 %v773, %v773
        %v780 = vpack.c.bf16 %v775, %v775
        %v783 = vunpack.c.l.b16 %v779
        %v784 = vunpack.c.l.b16 %v780
        %v785 = vpack.c.b16 %v784, %v783
        %787 = vst [vmem:[%s271] sm:$0xff] %v785
        %s788 = sand.u32 %s161, 1
        %s789 = scalar_lea.sflag [#allocation5], %s788
        %s790 = sand.u32 %s161, 1
        %s791 = smul.addr %s790, 8
        %s792 = scalar_lea.vmem [#allocation8], %s791
        // Predicated region
        $region53: #{tpu_custom_call.1} parent=43 // pred_check
          %p793 = pneg %p171
        $region54: #{tpu_custom_call.1} parent=43 // pred_check_branch
          %795 = sbr.rel (%p793) target = $region56
        $region55: #{tpu_custom_call.1} parent=43 // pred_region
          %s796 = smul.u32 2, %s22
          %s798 = ssub.s32 128, 128
          %799 = vsyncadd %s789, %s798
          %s800 = smul.addr %s796, 64
          %s801 = scalar_lea.hbm %s6, %s800
          %s803 = sshll.u32 %s792, 4
          %s804 = int_to_ptr.vmem [resolvable:$true] %s803
          %806 = dma.vmem_to_hbm [thread:$0]  %s804, 128, %s801, %s789
        $region56: #{tpu_custom_call.1} parent=43 // pred_fallthru
          _
      $region44: #{tpu_custom_call.1} parent=5 // pred_fallthru
        _
      %p807 = scmp.le.s32.totalorder 2, %s17
      // Predicated region
      $region57: #{tpu_custom_call.1} parent=5 // pred_check
        %p808 = pneg %p807
      $region58: #{tpu_custom_call.1} parent=5 // pred_check_branch
        %810 = sbr.rel (%p808) target = $region60
      $region59: #{tpu_custom_call.1} parent=5 // pred_region
        %s811 = ssub.s32 %s17, 2
        // Predicated region
        $region61: #{tpu_custom_call.1} parent=59 // pred_check
          %p812 = pneg %p177
        $region62: #{tpu_custom_call.1} parent=59 // pred_check_branch
          %814 = sbr.rel (%p812) target = $region64
        $region63: #{tpu_custom_call.1} parent=59 // pred_region
          %s815 = sand.u32 %s162, 1
          %s816 = scalar_lea.sflag [#allocation5], %s815
          %s817 = sand.u32 %s162, 1
          %s818 = smul.addr %s817, 8
          %s819 = scalar_lea.vmem [#allocation8], %s818
          %820 = dma.done %s816, 128
        $region64: #{tpu_custom_call.1} parent=59 // pred_fallthru
          _
      $region60: #{tpu_custom_call.1} parent=5 // pred_fallthru
        _
    $region6: #{tpu_custom_call.1} parent=1 // loop_footer
      %s21 = sadd.s32 1, %s17
    $region7: #{tpu_custom_call.1} parent=1 // loop_footer_branch
      %16 = sbr.rel target = $region3
    $region8: #{tpu_custom_call.1} parent=1 // loop_exit
      _
    %821 = vsyncpa [#allocation4], 1
    %s822 = scalar_lea.sflag [#allocation4], 1
    %823 = vsyncpa %s822, 1
    %824 = vsyncpa [#allocation7], 1
    %825 = vsyncpa [#allocation5], 1
    %s826 = scalar_lea.sflag [#allocation5], 1
    %827 = vsyncpa %s826, 1

</llo_original>
